<compile_context>
chip_gen: v7x
topology: tpu7x:2x2x1
jax: 0.10.0
libtpu: 0.0.40
codegen_flags: <defaults>
</compile_context>

<pallas_src>
import functools

import jax
import jax.numpy as jnp
from jax.experimental import pallas as pl
from jax.experimental.pallas import tpu as pltpu


def _x2_mean_f32(x2_ref, d, k, inv_s):
    """Mean over the collapsed middle dims of x2, accumulated in f32.

    x2_ref block is (TB, S/k, k*D) (lane-dense packed when D < 128): reduce
    the packed axis, fold the k lane groups back onto D, scale by 1/S.
    """
    s = jnp.sum(x2_ref[...], axis=1, dtype=jnp.float32)      # (TB, k*D)
    if k > 1:
        acc = s[:, :d]
        for j in range(1, k):
            acc = acc + s[:, j * d:(j + 1) * d]
        s = acc
    return s * inv_s


def _joiner_dma_kernel(x1_hbm, x2_ref, out_ref, copy_sem, *,
                       tb, f1, d, k, inv_s, b):
    """Fast path (F1 % 128 == 0): DMA x1 rows straight from HBM into the left
    slice of the output block, overlapped with the x2 mean compute."""
    i = pl.program_id(0)
    nsteps = pl.num_programs(0)
    row0 = pl.multiple_of(i * tb, tb)
    rem = b % tb                                   # static Python int

    def x1_copy(nrows):
        return pltpu.make_async_copy(
            x1_hbm.at[pl.ds(row0, nrows)],         # (nrows, F1) rows in HBM
            out_ref.at[:nrows, :f1],               # left slice of out block
            copy_sem,
        )

    # Issue the pass-through copy first so it runs under the mean compute.
    if rem == 0:
        x1_copy(tb).start()
    else:
        @pl.when(i < nsteps - 1)
        def _():
            x1_copy(tb).start()

        @pl.when(i == nsteps - 1)
        def _():
            x1_copy(rem).start()

    # Right slice of the output row: mean of x2 over collapsed middle dims.
    out_ref[:, f1:] = _x2_mean_f32(x2_ref, d, k, inv_s).astype(out_ref.dtype)

    # The copy must land before the pipeline writes the block back to HBM.
    if rem == 0:
        x1_copy(tb).wait()
    else:
        @pl.when(i < nsteps - 1)
        def _():
            x1_copy(tb).wait()

        @pl.when(i == nsteps - 1)
        def _():
            x1_copy(rem).wait()


def _joiner_vreg_kernel(x1_ref, x2_ref, out_ref, *, f1, d, k, inv_s):
    """Fallback path (F1 not a multiple of 128): copy x1 through vregs."""
    out_ref[:, :f1] = x1_ref[...].astype(out_ref.dtype)
    out_ref[:, f1:] = _x2_mean_f32(x2_ref, d, k, inv_s).astype(out_ref.dtype)


def _sublane_multiple(*dtypes):
    """Sublane multiple for the narrowest participating dtype (8/16/32)."""
    m = 8
    for dt in dtypes:
        m = max(m, 32 // max(jnp.dtype(dt).itemsize, 1))
    return m


def _pick_row_tile(b, row_bytes, budget_bytes, sublane):
    """Largest row tile (multiple of `sublane`, or full B) fitting the budget,
    capped so that the grid keeps >= ~4 steps when B is large enough."""
    if b <= sublane:
        return b
    tb = int(budget_bytes // max(row_bytes, 1))
    tb = (tb // sublane) * sublane
    tb = max(tb, sublane)
    if b >= 4 * sublane:
        cap = max(sublane, (b // (4 * sublane)) * sublane)
        tb = min(tb, cap)
    return b if tb >= b else tb


def joiner_flatten(x1, x2):
    """x1: (B, ...) rank >= 2, x2: (B, ..., D). Matches the torch module."""
    B = x1.shape[0]

    # Flatten(1) — pure layout glue (contiguous reshape, free).
    x1_flat = jnp.reshape(x1, (B, -1))
    F1 = x1_flat.shape[1]

    # Collapse all middle dims of x2 into a single reduction axis S.
    D = x2.shape[-1]
    x2_r = jnp.reshape(x2, (B, -1, D))
    S = x2_r.shape[1]

    # torch.cat promotes to the wider dtype of its operands.
    out_dtype = jnp.result_type(x1.dtype, x2.dtype)

    if S == 0:
        # torch.mean over an empty reduction is NaN.
        return jnp.concatenate(
            [x1_flat.astype(out_dtype), jnp.full((B, D), jnp.nan, out_dtype)],
            axis=1)

    # Lane-dense packing of x2 when D < 128 (free contiguous reshape).
    k = 1
    if 0 < D < 128 and 128 % D == 0:
        k_cand = 128 // D
        if S % k_cand == 0:
            k = k_cand
    Sp = S // k
    x2_p = jnp.reshape(x2_r, (B, Sp, k * D))
    inv_s = 1.0 / S

    # Generation-aware VMEM budgeting (v5e/v6e: 128 MiB phys, v7x: 64 MiB).
    try:
        phys_vmem = int(pltpu.get_tpu_info().vmem_capacity_bytes)
    except Exception:
        phys_vmem = 64 * 1024 * 1024
    phys_vmem = max(phys_vmem, 16 * 1024 * 1024)
    vmem_limit = min((phys_vmem * 3) // 4, 96 * 1024 * 1024)
    budget = vmem_limit // 2

    out_isz = jnp.dtype(out_dtype).itemsize
    x1_isz = jnp.dtype(x1_flat.dtype).itemsize
    x2_isz = jnp.dtype(x2_p.dtype).itemsize

    dma_x1 = (F1 % 128 == 0)   # lane-aligned concat seam -> direct-DMA path

    # Double-buffered per-row VMEM footprint for the pipelined blocks.
    row_bytes = 2 * ((F1 + D) * out_isz + Sp * k * D * x2_isz)
    if not dma_x1:
        row_bytes += 2 * F1 * x1_isz

    sublane = _sublane_multiple(x1_flat.dtype, x2_p.dtype, out_dtype)
    tb = _pick_row_tile(B, row_bytes, budget, sublane)

    grid = (pl.cdiv(B, tb),)
    cparams = pltpu.CompilerParams(
        dimension_semantics=("parallel",),
        vmem_limit_bytes=int(vmem_limit),
    )
    out_shape = jax.ShapeDtypeStruct((B, F1 + D), out_dtype)
    x2_spec = pl.BlockSpec((tb, Sp, k * D), lambda i: (i, 0, 0))
    out_spec = pl.BlockSpec((tb, F1 + D), lambda i: (i, 0))

    if dma_x1:
        kernel = functools.partial(
            _joiner_dma_kernel, tb=tb, f1=F1, d=D, k=k, inv_s=inv_s, b=B)
        return pl.pallas_call(
            kernel,
            out_shape=out_shape,
            grid=grid,
            in_specs=[pl.BlockSpec(memory_space=pl.ANY), x2_spec],
            out_specs=out_spec,
            scratch_shapes=[pltpu.SemaphoreType.DMA],
            compiler_params=cparams,
        )(x1_flat, x2_p)

    kernel = functools.partial(
        _joiner_vreg_kernel, f1=F1, d=D, k=k, inv_s=inv_s)
    return pl.pallas_call(
        kernel,
        out_shape=out_shape,
        grid=grid,
        in_specs=[pl.BlockSpec((tb, F1), lambda i: (i, 0)), x2_spec],
        out_specs=out_spec,
        compiler_params=cparams,
    )(x1_flat, x2_p)


def _reference(x1, x2):
    B = x1.shape[0]
    x1_flat = jnp.reshape(x1, (B, -1))
    dims = tuple(range(1, x2.ndim - 1))
    x2_m = jnp.mean(x2, axis=dims)                 # (B, D)
    return jnp.concatenate([x1_flat, x2_m], axis=1)


if __name__ == "__main__":
    key = jax.random.PRNGKey(0)
    k1, k2 = jax.random.split(key)

    # Small deterministic inputs consistent with the module's forward.
    x1 = jax.random.normal(k1, (2, 4, 16, 16), dtype=jnp.float32)  # NCHW
    x2 = jax.random.normal(k2, (2, 8, 32), dtype=jnp.float32)      # (B, S, D)

    out = joiner_flatten(x1, x2)
    jax.block_until_ready(out)

    ref = _reference(x1, x2)
    assert out.shape == (2, 4 * 16 * 16 + 32), out.shape
    assert out.dtype == ref.dtype, (out.dtype, ref.dtype)
    assert jnp.allclose(out, ref, atol=1e-5, rtol=1e-5), "mismatch vs reference"

    print("KERNEL_OK")
</pallas_src>

<mosaic_0001>
module attributes {stable_mosaic.version = 11 : i64} {
  func.func @_joiner_dma_kernel(%arg0: i32, %arg1: memref<2x1024xf32, #tpu.memory_space<any>>, %arg2: memref<2x2x128xf32, #tpu.memory_space<vmem>>, %arg3: memref<2x1056xf32, #tpu.memory_space<vmem>>, %arg4: memref<!tpu.dma_semaphore, #tpu.memory_space<semaphore_mem>>) attributes {dimension_semantics = [#tpu.dimension_semantics<parallel>], iteration_bounds = array<i64: 1>, scalar_prefetch = 0 : i64, scratch_operands = 1 : i64, tpu.core_type = #tpu.core_type<tc>, window_params = [{}, {transform_indices = @transform_1, window_bounds = array<i64: 2, 2, 128>}, {transform_indices = @transform_2, window_bounds = array<i64: 2, 1056>}]} {
    %c2_i32 = arith.constant 2 : i32
    %0 = arith.muli %arg0, %c2_i32 : i32
    %1 = tpu.assume_multiple %0, 2 : i32
    %c0_i32 = arith.constant 0 : i32
    %2 = tpu.memref_slice %arg1[%1, %c0_i32] : memref<2x1024xf32, #tpu.memory_space<any>> -> memref<2x1024xf32, #tpu.memory_space<any>>
    %c0_i32_0 = arith.constant 0 : i32
    %c0_i32_1 = arith.constant 0 : i32
    %3 = tpu.memref_slice %arg3[%c0_i32_0, %c0_i32_1] : memref<2x1056xf32, #tpu.memory_space<vmem>> -> memref<2x1024xf32, #tpu.memory_space<vmem>>
    tpu.enqueue_dma source(%2 : memref<2x1024xf32, #tpu.memory_space<any>>) target(%3 : memref<2x1024xf32, #tpu.memory_space<vmem>>) target_semaphore(%arg4 : memref<!tpu.dma_semaphore, #tpu.memory_space<semaphore_mem>>)
    %c0 = arith.constant 0 : index
    %c0_2 = arith.constant 0 : index
    %c0_3 = arith.constant 0 : index
    %4 = vector.load %arg2[%c0, %c0_2, %c0_3] : memref<2x2x128xf32, #tpu.memory_space<vmem>>, vector<2x2x128xf32>
    %cst = arith.constant dense<0.000000e+00> : vector<2x128xf32>
    %5 = vector.multi_reduction <add>, %4, %cst [1] : vector<2x2x128xf32> to vector<2x128xf32>
    %6 = vector.extract_strided_slice %5 {offsets = [0, 0], sizes = [2, 32], strides = [1, 1]} : vector<2x128xf32> to vector<2x32xf32>
    %7 = vector.extract_strided_slice %5 {offsets = [0, 32], sizes = [2, 32], strides = [1, 1]} : vector<2x128xf32> to vector<2x32xf32>
    %8 = arith.addf %6, %7 : vector<2x32xf32>
    %9 = vector.extract_strided_slice %5 {offsets = [0, 64], sizes = [2, 32], strides = [1, 1]} : vector<2x128xf32> to vector<2x32xf32>
    %10 = arith.addf %8, %9 : vector<2x32xf32>
    %11 = vector.extract_strided_slice %5 {offsets = [0, 96], sizes = [2, 32], strides = [1, 1]} : vector<2x128xf32> to vector<2x32xf32>
    %12 = arith.addf %10, %11 : vector<2x32xf32>
    %cst_4 = arith.constant 1.250000e-01 : f32
    %13 = vector.broadcast %cst_4 : f32 to vector<2x32xf32>
    %14 = arith.mulf %12, %13 : vector<2x32xf32>
    %c0_5 = arith.constant 0 : index
    %c1024 = arith.constant 1024 : index
    %15 = vector.load %arg3[%c0_5, %c1024] : memref<2x1056xf32, #tpu.memory_space<vmem>>, vector<2x32xf32>
    tpu.vector_store %arg3[%c0_5, %c1024], %14 {strides = array<i32>} : memref<2x1056xf32, #tpu.memory_space<vmem>>, vector<2x32xf32>,
    %c0_i32_6 = arith.constant 0 : i32
    %16 = tpu.memref_slice %arg1[%1, %c0_i32_6] : memref<2x1024xf32, #tpu.memory_space<any>> -> memref<2x1024xf32, #tpu.memory_space<any>>
    %c0_i32_7 = arith.constant 0 : i32
    %c0_i32_8 = arith.constant 0 : i32
    %17 = tpu.memref_slice %arg3[%c0_i32_7, %c0_i32_8] : memref<2x1056xf32, #tpu.memory_space<vmem>> -> memref<2x1024xf32, #tpu.memory_space<vmem>>
    tpu.wait_dma2 semaphore(%arg4 : memref<!tpu.dma_semaphore, #tpu.memory_space<semaphore_mem>>) src(%16 : memref<2x1024xf32, #tpu.memory_space<any>>) dst(%17 : memref<2x1024xf32, #tpu.memory_space<vmem>>)
    return
  }
  func.func @transform_1(%arg0: i32) -> (i32, i32, i32) {
    %c0_i32 = arith.constant 0 : i32
    %c0_i32_0 = arith.constant 0 : i32
    %c0_i32_1 = arith.constant 0 : i32
    return %arg0, %c0_i32, %c0_i32_0 : i32, i32, i32
  }
  func.func @transform_2(%arg0: i32) -> (i32, i32) {
    %c0_i32 = arith.constant 0 : i32
    %c0_i32_0 = arith.constant 0 : i32
    return %arg0, %c0_i32 : i32, i32
  }
}

</mosaic_0001>

<llo_original>
// kernel: tpu_custom_call.1
$region0: #{tpu_custom_call.1}
  #allocation0 [shape = 'u32[]', space=smem, size = 0x4, offset = 0x4, fixed_abs, tag = 'smem constant byte address 0x4 - core index']
  #allocation1 [shape = 'u32[144,128]{1,0:T(1,128)}', space=vmem, size = 0x12000, scoped, tag = 'internal scratch']
  #allocation2 [shape = 's32[1]{0}', space=sflag, size = 0x4, scoped, tag = 'scratch operand']
  #allocation7 [shape = 's32[]', space=sflag, size = 0x4, offset = 0, fixed_abs, tag = 'sflag constant byte address 0x0 - dummy sync flag']
  #allocation8 [shape = 's32[]', space=sflag, size = 0x4, offset = 0, fixed_abs, tag = 'sflag constant byte address 0x0 - dummy sync flag']
  #allocation9 [shape = 'u32[]', space=smem, size = 0x4, offset = 0x44, fixed_abs, tag = 'smem constant byte address 0x44 - assertion arg 0']
  #allocation10 [shape = 'u32[]', space=smem, size = 0x4, offset = 0x48, fixed_abs, tag = 'smem constant byte address 0x48 - assertion arg 1']
  %s0 = inlined_call_operand.hbm [shape: f32[2,1024], index: 0, kind: input, shape index: {}]
  %s1 = inlined_call_operand.hbm [shape: f32[2,2,128], index: 1, kind: input, shape index: {}]
  %s2 = inlined_call_operand.hbm [shape: f32[2,1056], index: 2, kind: output, shape index: {}]
  %s3 = sld [smem:[#allocation0]]
  $region22: #{tpu_custom_call.1} parent=0
    _
  %s5 = ssub.s32 1, %s3
  %s6 = scalar_select 0, %s5, %s3
  $region1: #{tpu_custom_call.1} parent=0
    #allocation3 [shape = 'u8[2048]{0}', space=vmem, size = 0x800, scoped, tag = 'input window, operand 1, single buffered']
    #allocation4 [shape = 's32[1]{0}', space=sflag, size = 0x4, scoped, tag = 'scoped memory for tpu_custom_call.1']
    #allocation5 [shape = 's32[1]{0}', space=sflag, size = 0x4, scoped, tag = 'scoped memory for tpu_custom_call.1']
    #allocation6 [shape = 'u8[9216]{0}', space=vmem, size = 0x2400, scoped, tag = 'output window, operand 0, single buffered']
    %7 = vsyncpa [#allocation4], 0
    %8 = vsyncpa [#allocation5], 0
    // Predicated region
    $region2: #{tpu_custom_call.1} parent=1 // pred_check
      _
    $region3: #{tpu_custom_call.1} parent=1 // pred_check_branch
      %10 = sbr.rel (0) target = $region5
    $region4: #{tpu_custom_call.1} parent=1 // pred_region
      %s12 = ssub.s32 64, 64
      %13 = vsyncadd [#allocation4], %s12
      %s14 = sshll.u32 [#allocation3], 4
      %s15 = int_to_ptr.vmem [resolvable:$true] %s14
      %20 = dma.hbm_to_vmem [thread:$0]  %s1, 64, %s15, [#allocation4], 32, 32, 2
    $region5: #{tpu_custom_call.1} parent=1 // pred_fallthru
      _
    // Predicated region
    $region6: #{tpu_custom_call.1} parent=1 // pred_check
      _
    $region7: #{tpu_custom_call.1} parent=1 // pred_check_branch
      %22 = sbr.rel (0) target = $region9
    $region8: #{tpu_custom_call.1} parent=1 // pred_region
      %23 = dma.done [#allocation4], 64
    $region9: #{tpu_custom_call.1} parent=1 // pred_fallthru
      _
    %s24 = smul.u32 0, 2
    %s25 = sshra.s32 %s24, 1
    %s26 = sand.u32 %s24, 1
    %s27 = smul.u32 %s25, 8
    %s28 = smul.addr %s27, 32
    %s29 = scalar_lea.hbm %s0, %s28
    // Predicated region
    $region10: #{tpu_custom_call.1} parent=1 // pred_check
      _
    $region11: #{tpu_custom_call.1} parent=1 // pred_check_branch
      %31 = sbr.rel target = $region13
    $region12: #{tpu_custom_call.1} parent=1 // pred_region
      %32 = sst [smem:[#allocation9]] [#allocation8]
      %33 = sst [smem:[#allocation10]] [#allocation7]
    $region13: #{tpu_custom_call.1} parent=1 // pred_fallthru
      _
    %35 = shalt.err (0)
    %s37 = sshll.u32 [#allocation6], 4
    %s38 = int_to_ptr.vmem [resolvable:$true] %s37
    %40 = dma.hbm_to_vmem [thread:$0]  %s29, 256, %s38, [#allocation2]
    %v41 = vld [vmem:[#allocation3] sm:$0x3]
    %v42 = vld [vmem:[#allocation3 + $0x2] sm:$0x3]
    %vm43 = vcmask 1041408
    %v44 = vsel %vm43, %v41, 0.0
    %v45 = vrot.slane %v44, 4
    %v46 = vadd.f32 %v44, %v45
    %v47 = vrot.slane %v46, 2
    %v48 = vadd.f32 %v46, %v47
    %v49 = vrot.slane %v48, 1
    %v50 = vadd.f32 %v48, %v49
    %v51 = vsel %vm43, %v42, 0.0
    %v52 = vrot.slane %v51, 4
    %v53 = vadd.f32 %v51, %v52
    %v54 = vrot.slane %v53, 2
    %v55 = vadd.f32 %v53, %v54
    %v56 = vrot.slane %v55, 1
    %v57 = vadd.f32 %v55, %v56
    %60 = vrot.lane.b32.xlu0 %v50, 96
    %v61 = vpop.permute.xlu0 %60
    %62 = vrot.lane.b32.xlu0 %v57, 96
    %v63 = vpop.permute.xlu0 %62
    %v66 = vadd.f32 %v50, %v61
    %v67 = vadd.f32 %v57, %v63
    %68 = vrot.lane.b32.xlu0 %v50, 64
    %v69 = vpop.permute.xlu0 %68
    %70 = vrot.lane.b32.xlu0 %v57, 64
    %v71 = vpop.permute.xlu0 %70
    %v74 = vadd.f32 %v66, %v69
    %v75 = vadd.f32 %v67, %v71
    %76 = vrot.lane.b32.xlu0 %v50, 32
    %v77 = vpop.permute.xlu0 %76
    %78 = vrot.lane.b32.xlu0 %v57, 32
    %v79 = vpop.permute.xlu0 %78
    %v82 = vadd.f32 %v74, %v77
    %v83 = vadd.f32 %v75, %v79
    %v84 = vmul.f32 %v82, 0.125
    %v85 = vmul.f32 %v83, 0.125
    %v89 = vunpack.c.l.s4 1983009808
    %v90 = vunpack.c.0.s8 %v89
    %v91 = vlaneseq
    %v92 = vshrl.u32 %v91, 7
    %v93 = vsub.s32 %v90, %v92
    %v94 = vrot.slane %v84, %v93
    %v96 = vunpack.c.l.s4 1983009808
    %v97 = vunpack.c.0.s8 %v96
    %v98 = vlaneseq
    %v99 = vshrl.u32 %v98, 7
    %v100 = vsub.s32 %v97, %v99
    %v101 = vrot.slane %v85, %v100
    %vm102 = vcmask 1044484
    %v103 = vsel %vm102, %v94, %v94
    %vm104 = vcmask 1046534
    %v105 = vsel %vm104, %v94, %v103
    %v106 = vrot.slane %v101, 7
    %vm107 = vcmask 1041409
    %v108 = vsel %vm107, %v106, %v105
    %vm109 = vcmask 1043459
    %v110 = vsel %vm109, %v106, %v108
    %vm111 = vcmask 1045509
    %v112 = vsel %vm111, %v106, %v110
    %vm113 = vcmask 1047559
    %v114 = vsel %vm113, %v106, %v112
    %vm116 = vcmask 254976
    %117 = vst.msk [vmem:[#allocation6 + $0x10] sm:$0x3] %vm116, %v114
    %s118 = smul.u32 2, 1
    %s119 = smul.u32 %s118, 8
    %s120 = sshll.u32 %s119, 4
    %121 = dma.done [#allocation2], %s120
    // Predicated region
    $region14: #{tpu_custom_call.1} parent=1 // pred_check
      _
    $region15: #{tpu_custom_call.1} parent=1 // pred_check_branch
      %123 = sbr.rel (0) target = $region17
    $region16: #{tpu_custom_call.1} parent=1 // pred_region
      %s125 = ssub.s32 288, 288
      %126 = vsyncadd [#allocation5], %s125
      %s128 = sshll.u32 [#allocation6], 4
      %s129 = int_to_ptr.vmem [resolvable:$true] %s128
      %131 = dma.vmem_to_hbm [thread:$0]  %s129, 288, %s2, [#allocation5]
    $region17: #{tpu_custom_call.1} parent=1 // pred_fallthru
      _
    // Predicated region
    $region18: #{tpu_custom_call.1} parent=1 // pred_check
      _
    $region19: #{tpu_custom_call.1} parent=1 // pred_check_branch
      %133 = sbr.rel (0) target = $region21
    $region20: #{tpu_custom_call.1} parent=1 // pred_region
      %134 = dma.done [#allocation5], 288
    $region21: #{tpu_custom_call.1} parent=1 // pred_fallthru
      _
    %135 = vsyncpa [#allocation4], 1
    %136 = vsyncpa [#allocation5], 1
  %137 = vsyncmov [#allocation2]
  %s138 = vpop.sfrf %137
  %p139 = scmp.eq.s32.totalorder %s138, 0
  %p140 = pneg %p139
  %142 = shalt.err (%p140)

</llo_original>
